<compile_context>
chip_gen: v6e
topology: v6e:2x2x1
jax: 0.10.0
libtpu: 0.0.40
codegen_flags: <defaults>
</compile_context>

<pallas_src>
import jax
import jax.numpy as jnp
from jax import lax
from jax.experimental import pallas as pl
from jax.experimental.pallas import tpu as pltpu


def _layer_norm(x, g, b, eps=1e-5):
    m = jnp.mean(x, axis=-1, keepdims=True)
    c = x - m
    v = jnp.mean(c * c, axis=-1, keepdims=True)
    return c * lax.rsqrt(v + eps) * g + b


# --------------------------------------------------------------------------
# Kernel 1: user -> graph segment-sum.  Grid over N tiles only; user_x is read
# exactly once.  Output [B_pad, F] is resident across the grid (accumulator).
# --------------------------------------------------------------------------
def _segsum_kernel(ids_ref, ux_ref, uf_ref):
    n = pl.program_id(0)

    @pl.when(n == 0)
    def _():
        uf_ref[...] = jnp.zeros_like(uf_ref)

    B_pad = uf_ref.shape[0]
    tn = ux_ref.shape[0]
    ids = ids_ref[0]                                                 # [1, tn] int32
    row_gid = lax.broadcasted_iota(jnp.int32, (B_pad, tn), 0)
    onehot = (row_gid == ids).astype(jnp.bfloat16)                   # [B_pad, tn]
    uf_ref[...] += jnp.dot(onehot, ux_ref[...],
                           preferred_element_type=jnp.float32)       # [B_pad, F]


# --------------------------------------------------------------------------
# Kernel 2: per-graph MLPs + user/time attention + readout MLP.
# Grid over B tiles only ("parallel").
# vecs rows: 0 b_u1, 1 lnu_g, 2 lnu_b, 3 b_u2, 4 bq, 5 bk, 6 bv, 7 bo,
#            8 ln_g, 9 ln_b.   rvecs rows: 0 br1(BN-folded), 1 wr2_row.
# --------------------------------------------------------------------------
def _readout_kernel(uf_ref, time_ref, hm_fh_ref, hm_hf_ref,
                    w_u1_ref, w_u2_ref, wq_ref, wk_ref, wv_ref, wo_ref,
                    wr1_ref, vecs_ref, rvecs_ref, br2_ref, pred_ref):
    f32, bf16 = jnp.float32, jnp.bfloat16
    tb, T, F = time_ref.shape
    H = hm_hf_ref.shape[0]
    D = F // H

    uf = uf_ref[...]                                                 # [tb, F] f32
    uf_bf = uf.astype(bf16)

    b_u1, lnu_g, lnu_b, b_u2 = (vecs_ref[0], vecs_ref[1],
                                vecs_ref[2], vecs_ref[3])
    bq, bk, bv, bo = vecs_ref[4], vecs_ref[5], vecs_ref[6], vecs_ref[7]
    ln_g, ln_b = vecs_ref[8], vecs_ref[9]
    br1 = rvecs_ref[0]
    wr2_row = rvecs_ref[1]

    # ---- user_mlp: Linear -> LayerNorm -> Dropout(id) -> ReLU -> Linear ----
    h = jnp.dot(uf_bf, w_u1_ref[...], preferred_element_type=f32) + b_u1
    h = _layer_norm(h, lnu_g, lnu_b)
    h = jnp.maximum(h, 0.0)
    h = jnp.dot(h.astype(bf16), w_u2_ref[...], preferred_element_type=f32) + b_u2
    summed_user = jnp.sum(h, axis=1, keepdims=True) * (1.0 / F)      # [tb, 1]

    # ---- attention projections (separate matmuls on VMEM-resident inputs) ----
    q = jnp.dot(uf_bf, wq_ref[...], preferred_element_type=f32) + bq       # [tb,F]
    t_bf = time_ref[...]                                                   # [tb,T,F] bf16
    k3 = jnp.einsum('btf,fg->btg', t_bf, wk_ref[...],
                    preferred_element_type=f32) + bk                       # [tb,T,F]
    v3 = jnp.einsum('btf,fg->btg', t_bf, wv_ref[...],
                    preferred_element_type=f32) + bv                       # [tb,T,F]

    # ---- scores via one wide-M matmul (head-select mask algebra) ----
    qk3 = q[:, None, :] * k3                                               # [tb,T,F] f32 VPU
    scores = jnp.einsum('btf,fh->bth', qk3.astype(bf16), hm_fh_ref[...],
                        preferred_element_type=f32) * (D ** -0.5)          # [tb,T,H]
    smax = jnp.max(scores, axis=1, keepdims=True)
    e = jnp.exp(scores - smax)
    attn = e * pl.reciprocal(jnp.sum(e, axis=1, keepdims=True))            # exact recip

    # ---- context: broadcast attn back to feature lanes, VPU multiply + T reduce ----
    a3 = jnp.einsum('bth,hf->btf', attn.astype(bf16), hm_hf_ref[...],
                    preferred_element_type=f32)                            # [tb,T,F]
    ctx = jnp.sum(a3 * v3, axis=1)                                         # [tb, F]
    attended = jnp.dot(ctx.astype(bf16), wo_ref[...],
                       preferred_element_type=f32) + bo

    # ---- residual + LayerNorm, readout MLP (eval-mode BN folded into wr1/br1) ----
    rf = _layer_norm(uf + attended, ln_g, ln_b)
    r = jnp.dot(rf.astype(bf16), wr1_ref[...], preferred_element_type=f32) + br1
    r = jnp.maximum(r, 0.0)
    r2 = jnp.sum(r * wr2_row, axis=1, keepdims=True) + br2_ref[...]        # [tb, 1]

    pred_ref[...] = summed_user + r2


# --------------------------------------------------------------------------
# Host-side parameter fusion / folding / packing.
# --------------------------------------------------------------------------
def prepare_params(p):
    bf = jnp.bfloat16
    bn_scale = p['bn_g'] * (1.0 + 1e-5) ** -0.5          # BN eval stats: mean=0, var=1
    vecs = jnp.concatenate([p['b_u1'], p['lnu_g'], p['lnu_b'], p['b_u2'],
                            p['bq'], p['bk'], p['bv'], p['bo'],
                            p['ln_g'], p['ln_b']], axis=0).astype(jnp.float32)   # [10,F]
    rvecs = jnp.concatenate([p['br1'] * bn_scale + p['bn_b'],                     # BN folded
                             p['wr2'].T], axis=0).astype(jnp.float32)             # [2,3F]
    return dict(
        w_u1=p['w_u1'].astype(bf), w_u2=p['w_u2'].astype(bf),
        wq=p['wq'].astype(bf), wk=p['wk'].astype(bf), wv=p['wv'].astype(bf),
        wo=p['wo'].astype(bf),
        wr1=(p['wr1'] * bn_scale).astype(bf),             # BN folded into weight
        vecs=vecs, rvecs=rvecs,
        br2=p['br2'].astype(jnp.float32),                 # [1,1]
    )


def _head_masks(F, H):
    hm_hf = (jnp.arange(F, dtype=jnp.int32)[None, :] // (F // H)
             == jnp.arange(H, dtype=jnp.int32)[:, None]).astype(jnp.bfloat16)   # [H,F]
    return hm_hf, hm_hf.T                                                        # [H,F],[F,H]


# --------------------------------------------------------------------------
# Wrapper
# --------------------------------------------------------------------------
def user_time_attention_readout(user_x, user_batch_ids, time_x_flat, params,
                                num_time_nodes, num_heads, *, tb=None, tn=None):
    N, F = user_x.shape
    H = num_heads
    assert F % H == 0
    T = num_time_nodes
    assert time_x_flat.shape[0] % T == 0
    B = time_x_flat.shape[0] // T

    # --- B tiling: MXU-native M.  Prefer an even number of B tiles so v7x's
    #     two TensorCores split the "parallel" axis evenly (no effect v5e/v6e).
    if tb is None:
        tb = min(256, -(-B // 8) * 8)
        half = tb // 2
        if (-(-B // tb)) % 2 == 1 and half >= 8 and half % 8 == 0 \
                and (-(-B // half)) % 2 == 0:
            tb = half
    assert tb % 8 == 0
    B_pad = -(-B // tb) * tb
    nb = B_pad // tb

    # --- N tiling for the segment-sum stream.
    if tn is None:
        tn = min(-(-N // 8) * 8, 2048)
    assert tn % 8 == 0
    N_pad = -(-N // tn) * tn
    nn = N_pad // tn

    bf16 = jnp.bfloat16

    # pad + repack inputs (layout plumbing outside the kernels)
    user_x_p = jnp.zeros((N_pad, F), bf16).at[:N].set(user_x.astype(bf16))
    # ids outside [0, B) and the -1 padding rows are silently dropped
    # (same semantics as segment_sum).
    ids_p = jnp.full((N_pad,), -1, jnp.int32).at[:N].set(user_batch_ids.astype(jnp.int32))
    ids3 = ids_p.reshape(nn, 1, tn)
    time_x = time_x_flat.reshape(B, T, F).astype(bf16)
    time_x_p = jnp.zeros((B_pad, T, F), bf16).at[:B].set(time_x)

    hm_hf, hm_fh = _head_masks(F, H)                      # hoisted constants
    pp = prepare_params(params)
    weight_args = (hm_fh, hm_hf, pp['w_u1'], pp['w_u2'], pp['wq'], pp['wk'],
                   pp['wv'], pp['wo'], pp['wr1'], pp['vecs'], pp['rvecs'], pp['br2'])

    # ---- pass 1: segment-sum (user_x read exactly once) ----
    uf = pl.pallas_call(
        _segsum_kernel,
        out_shape=jax.ShapeDtypeStruct((B_pad, F), jnp.float32),
        grid_spec=pltpu.PrefetchScalarGridSpec(
            num_scalar_prefetch=0,
            grid=(nn,),
            in_specs=[pl.BlockSpec((1, 1, tn), lambda n: (n, 0, 0)),   # ids
                      pl.BlockSpec((tn, F), lambda n: (n, 0))],        # user_x
            out_specs=pl.BlockSpec((B_pad, F), lambda n: (0, 0))),     # resident acc
        compiler_params=pltpu.CompilerParams(
            dimension_semantics=("arbitrary",),
            vmem_limit_bytes=48 * 1024 * 1024),
    )(ids3, user_x_p)

    # ---- pass 2: per-graph readout ----
    def _full(a):
        zeros = (0,) * a.ndim
        return pl.BlockSpec(a.shape, lambda b, _z=zeros: _z)           # weight resident

    pred = pl.pallas_call(
        _readout_kernel,
        out_shape=jax.ShapeDtypeStruct((B_pad, 1), jnp.float32),
        grid_spec=pltpu.PrefetchScalarGridSpec(
            num_scalar_prefetch=0,
            grid=(nb,),
            in_specs=[pl.BlockSpec((tb, F), lambda b: (b, 0)),         # user_factor
                      pl.BlockSpec((tb, T, F), lambda b: (b, 0, 0))]   # time_x
                     + [_full(a) for a in weight_args],
            out_specs=pl.BlockSpec((tb, 1), lambda b: (b, 0))),        # pred column
        compiler_params=pltpu.CompilerParams(
            dimension_semantics=("parallel",),
            vmem_limit_bytes=48 * 1024 * 1024),    # <= v7x 64 MiB physical w/ headroom
    )(uf, time_x_p, *weight_args)

    return pred.reshape(B_pad)[:B]                 # pred: [B]


# --------------------------------------------------------------------------
# Parameter init + references
# --------------------------------------------------------------------------
def init_params(key, in_feats, out_feats=1):
    F = in_feats
    hid = 3 * F
    keys = iter(jax.random.split(key, 32))

    def w(shape, scale=0.1):
        return scale * jax.random.normal(next(keys), shape, jnp.float32)

    return dict(
        # user_mlp: Linear(F,F), LayerNorm(F), Linear(F,F)
        w_u1=w((F, F)), b_u1=w((1, F)),
        lnu_g=1.0 + w((1, F)), lnu_b=w((1, F)),
        w_u2=w((F, F)), b_u2=w((1, F)),
        # MultiheadAttention in/out projections
        wq=w((F, F)), wk=w((F, F)), wv=w((F, F)),
        bq=w((1, F)), bk=w((1, F)), bv=w((1, F)),
        wo=w((F, F)), bo=w((1, F)),
        # post-attention LayerNorm
        ln_g=1.0 + w((1, F)), ln_b=w((1, F)),
        # readout_mlp (num_readout_layers=2): Linear(F,3F), BN(3F), Linear(3F,1)
        wr1=w((F, hid)), br1=w((1, hid)),
        bn_g=1.0 + w((1, hid)), bn_b=w((1, hid)),
        wr2=w((hid, out_feats)), br2=w((1, out_feats)),
    )


def reference_forward_f32(user_x, ids, time_x_flat, p, T, H, B):
    """Pure-JAX f32 reference mirroring the PyTorch module (eval mode)."""
    F = user_x.shape[1]
    hp = lax.Precision.HIGHEST
    uf = jax.ops.segment_sum(user_x, ids, num_segments=B)

    h = jnp.dot(uf, p['w_u1'], precision=hp) + p['b_u1']
    h = _layer_norm(h, p['lnu_g'], p['lnu_b'])
    h = jnp.maximum(h, 0.0)
    h = jnp.dot(h, p['w_u2'], precision=hp) + p['b_u2']
    summed_user = jnp.sum(h, axis=1) / F

    t = time_x_flat.reshape(B, T, F)
    q = jnp.dot(uf, p['wq'], precision=hp) + p['bq']
    k = jnp.einsum('btf,fg->btg', t, p['wk'], precision=hp) + p['bk']
    v = jnp.einsum('btf,fg->btg', t, p['wv'], precision=hp) + p['bv']
    D = F // H
    qh = q.reshape(B, H, D)
    kh = k.reshape(B, T, H, D)
    vh = v.reshape(B, T, H, D)
    scores = jnp.einsum('bhd,bthd->bht', qh, kh, precision=hp) / (D ** 0.5)
    attn = jax.nn.softmax(scores, axis=-1)
    ctx = jnp.einsum('bht,bthd->bhd', attn, vh, precision=hp).reshape(B, F)
    attended = jnp.dot(ctx, p['wo'], precision=hp) + p['bo']

    rf = _layer_norm(uf + attended, p['ln_g'], p['ln_b'])
    r = jnp.dot(rf, p['wr1'], precision=hp) + p['br1']
    r = r * (p['bn_g'] * (1.0 + 1e-5) ** -0.5) + p['bn_b']     # BN eval stats
    r = jnp.maximum(r, 0.0)
    r = (jnp.dot(r, p['wr2'], precision=hp) + p['br2']).reshape(-1)   # Flatten(0)
    return summed_user + r


def reference_forward_sim(user_x, ids, time_x_flat, pp, hm_hf, T, H, B):
    """Pure-JAX mirror of the kernel math (bf16 MXU operands, f32 accumulation)."""
    bf16, f32 = jnp.bfloat16, jnp.float32
    F = user_x.shape[1]
    D = F // H
    hm_fh = hm_hf.T

    def mm(x, w):
        return jnp.dot(x.astype(bf16), w.astype(bf16), preferred_element_type=f32)

    uf = jax.ops.segment_sum(user_x.astype(bf16).astype(f32), ids, num_segments=B)

    vecs = pp['vecs']
    b_u1, lnu_g, lnu_b, b_u2 = vecs[0], vecs[1], vecs[2], vecs[3]
    bq, bk, bv, bo = vecs[4], vecs[5], vecs[6], vecs[7]
    ln_g, ln_b = vecs[8], vecs[9]
    br1, wr2_row = pp['rvecs'][0], pp['rvecs'][1]

    h = mm(uf, pp['w_u1']) + b_u1
    h = _layer_norm(h, lnu_g, lnu_b)
    h = jnp.maximum(h, 0.0)
    h = mm(h, pp['w_u2']) + b_u2
    summed_user = jnp.sum(h, axis=1, keepdims=True) / F

    q = mm(uf, pp['wq']) + bq
    t = time_x_flat.reshape(B, T, F).astype(bf16)
    k3 = jnp.einsum('btf,fg->btg', t, pp['wk'], preferred_element_type=f32) + bk
    v3 = jnp.einsum('btf,fg->btg', t, pp['wv'], preferred_element_type=f32) + bv

    qk3 = q[:, None, :] * k3
    scores = jnp.einsum('btf,fh->bth', qk3.astype(bf16), hm_fh,
                        preferred_element_type=f32) * (D ** -0.5)
    attn = jax.nn.softmax(scores, axis=1)
    a3 = jnp.einsum('bth,hf->btf', attn.astype(bf16), hm_hf,
                    preferred_element_type=f32)
    ctx = jnp.sum(a3 * v3, axis=1)
    attended = mm(ctx, pp['wo']) + bo

    rf = _layer_norm(uf + attended, ln_g, ln_b)
    r = mm(rf, pp['wr1']) + br1
    r = jnp.maximum(r, 0.0)
    r2 = jnp.sum(r * wr2_row, axis=1, keepdims=True) + pp['br2']
    return (summed_user + r2)[:, 0]


if __name__ == "__main__":
    B, F, T, H = 16, 32, 8, 4         # graphs, in_feats, num_time_nodes, num_heads
    N = 40                            # total user nodes across the batch

    key = jax.random.PRNGKey(0)
    k_user, k_ids, k_time, k_param = jax.random.split(key, 4)
    user_x = jax.random.normal(k_user, (N, F), jnp.float32)
    user_batch_ids = jax.random.randint(k_ids, (N,), 0, B, jnp.int32)
    time_x_flat = jax.random.normal(k_time, (B * T, F), jnp.float32)
    params = init_params(k_param, F)

    # tb=8, tn=16 -> segment-sum grid (3,) ["arbitrary"], readout grid (2,) ["parallel"]
    pred = user_time_attention_readout(user_x, user_batch_ids, time_x_flat, params,
                                       num_time_nodes=T, num_heads=H, tb=8, tn=16)
    pred = jax.block_until_ready(pred)
    assert pred.shape == (B,)

    pp = prepare_params(params)
    hm_hf, _ = _head_masks(F, H)
    ref_sim = reference_forward_sim(user_x, user_batch_ids, time_x_flat, pp, hm_hf, T, H, B)
    ref_f32 = reference_forward_f32(user_x, user_batch_ids, time_x_flat, params, T, H, B)

    # tight check vs. the bf16-operand simulation of the kernel math
    assert jnp.allclose(pred, ref_sim, rtol=1e-2, atol=1e-2), (pred, ref_sim)
    # loose check vs. the exact f32 PyTorch-equivalent reference (bf16 MXU rounding)
    assert jnp.allclose(pred, ref_f32, rtol=8e-2, atol=8e-2), (pred, ref_f32)
    print("KERNEL_OK")
</pallas_src>

<mosaic_0001>
module attributes {stable_mosaic.version = 11 : i64} {
  func.func @_segsum_kernel(%arg0: i32, %arg1: memref<1x1x16xi32, #tpu.memory_space<vmem>>, %arg2: memref<16x32xbf16, #tpu.memory_space<vmem>>, %arg3: memref<16x32xf32, #tpu.memory_space<vmem>>) attributes {dimension_semantics = [#tpu.dimension_semantics<arbitrary>], iteration_bounds = array<i64: 3>, scalar_prefetch = 0 : i64, scratch_operands = 0 : i64, tpu.core_type = #tpu.core_type<tc>, window_params = [{transform_indices = @transform_0, window_bounds = array<i64: 1, 1, 16>}, {transform_indices = @transform_1, window_bounds = array<i64: 16, 32>}, {pipeline_mode = #tpu.pipeline_mode<synchronous>, transform_indices = @transform_2, window_bounds = array<i64: 16, 32>}]} {
    %c0_i32 = arith.constant 0 : i32
    %0 = arith.cmpi eq, %arg0, %c0_i32 : i32
    %1 = arith.extui %0 : i1 to i32
    %c0_i32_0 = arith.constant 0 : i32
    %2 = arith.cmpi ne, %1, %c0_i32_0 : i32
    scf.if %2 {
      %cst_9 = arith.constant 0.000000e+00 : f32
      %16 = vector.broadcast %cst_9 : f32 to vector<16x32xf32>
      %c0_10 = arith.constant 0 : index
      %c0_11 = arith.constant 0 : index
      %17 = vector.load %arg3[%c0_10, %c0_11] : memref<16x32xf32, #tpu.memory_space<vmem>>, vector<16x32xf32>
      tpu.vector_store %arg3[%c0_10, %c0_11], %16 {strides = array<i32>} : memref<16x32xf32, #tpu.memory_space<vmem>>, vector<16x32xf32>,
    } else {
    }
    %c0 = arith.constant 0 : index
    %c0_1 = arith.constant 0 : index
    %c0_2 = arith.constant 0 : index
    %3 = vector.load %arg1[%c0, %c0_1, %c0_2] : memref<1x1x16xi32, #tpu.memory_space<vmem>>, vector<1x1x16xi32>
    %4 = vector.shape_cast %3 : vector<1x1x16xi32> to vector<1x16xi32>
    %5 = tpu.iota {dimensions = array<i32: 0>} : vector<16x16xi32>
    %6 = vector.broadcast %4 : vector<1x16xi32> to vector<16x16xi32>
    %7 = arith.cmpi eq, %5, %6 : vector<16x16xi32>
    %8 = arith.extui %7 : vector<16x16xi1> to vector<16x16xi32>
    %9 = arith.sitofp %8 : vector<16x16xi32> to vector<16x16xf32>
    %10 = arith.truncf %9 : vector<16x16xf32> to vector<16x16xbf16>
    %c0_3 = arith.constant 0 : index
    %c0_4 = arith.constant 0 : index
    %11 = vector.load %arg3[%c0_3, %c0_4] : memref<16x32xf32, #tpu.memory_space<vmem>>, vector<16x32xf32>
    %c0_5 = arith.constant 0 : index
    %c0_6 = arith.constant 0 : index
    %12 = vector.load %arg2[%c0_5, %c0_6] : memref<16x32xbf16, #tpu.memory_space<vmem>>, vector<16x32xbf16>
    %cst = arith.constant dense<0.000000e+00> : vector<16x32xf32>
    %13 = tpu.matmul %10, %12, %cst {dimension_numbers = #tpu.dot_dimension_numbers<[1], [0], [0], [1], [0, 0, 1, 1], [], []>} : vector<16x16xbf16>, vector<16x32xbf16>, vector<16x32xf32> -> vector<16x32xf32>
    %14 = arith.addf %11, %13 : vector<16x32xf32>
    %c0_7 = arith.constant 0 : index
    %c0_8 = arith.constant 0 : index
    %15 = vector.load %arg3[%c0_7, %c0_8] : memref<16x32xf32, #tpu.memory_space<vmem>>, vector<16x32xf32>
    tpu.vector_store %arg3[%c0_7, %c0_8], %14 {strides = array<i32>} : memref<16x32xf32, #tpu.memory_space<vmem>>, vector<16x32xf32>,
    return
  }
  func.func @transform_0(%arg0: i32) -> (i32, i32, i32) {
    %c0_i32 = arith.constant 0 : i32
    %c0_i32_0 = arith.constant 0 : i32
    %c0_i32_1 = arith.constant 0 : i32
    return %arg0, %c0_i32, %c0_i32_0 : i32, i32, i32
  }
  func.func @transform_1(%arg0: i32) -> (i32, i32) {
    %c0_i32 = arith.constant 0 : i32
    %c0_i32_0 = arith.constant 0 : i32
    return %arg0, %c0_i32 : i32, i32
  }
  func.func @transform_2(%arg0: i32) -> (i32, i32) {
    %c0_i32 = arith.constant 0 : i32
    %c0_i32_0 = arith.constant 0 : i32
    %c0_i32_1 = arith.constant 0 : i32
    return %c0_i32, %c0_i32_0 : i32, i32
  }
}

</mosaic_0001>

<llo_original>
// kernel: tpu_custom_call.1
$region0: #{tpu_custom_call.1}
  #allocation0 [shape = 'u32[]', space=smem, size = 0x4, offset = 0x4, fixed_abs, tag = 'smem constant byte address 0x4 - core index']
  #allocation1 [shape = 'u32[144,128]{1,0:T(1,128)}', space=vmem, size = 0x12000, scoped, tag = 'internal scratch']
  %s0 = inlined_call_operand.vmem [shape: s32[3,1,16], index: 0, kind: input, shape index: {}]
  %s1 = inlined_call_operand.vmem [shape: bf16[48,32], index: 1, kind: input, shape index: {}]
  %s2 = inlined_call_operand.hbm [shape: f32[16,32], index: 2, kind: output, shape index: {}]
  %s3 = sld [smem:[#allocation0]]
  $region45: #{tpu_custom_call.1} parent=0
    _
  %s5 = ssub.s32 1, %s3
  %s6 = scalar_select 0, %s5, %s3
  $region1: #{tpu_custom_call.1} parent=0
    #allocation2 [shape = 'u8[8192]{0}', space=vmem, size = 0x2000, scoped, tag = 'output window, operand 0, single buffered']
    #allocation3 [shape = 's32[2]{0}', space=sflag, size = 0x8, scoped, tag = 'scoped memory for tpu_custom_call.1']
    %7 = vsyncpa [#allocation3], 0
    loop: start=0, step=1, limit=5
    $region2: #{tpu_custom_call.1} parent=1 // loop_pre_header
      _
    $region3: #{tpu_custom_call.1} parent=1 // loop_header
      %s9 = sphi 0, %s13
      %p10 = scmp.ge.s32.totalorder %s9, 5
      %s19 = sphi 0, %s21
      %s22 = sphi 0, %s19
      %s23 = sphi 0, %s22
      %s39 = sphi 0, %s23
      %s45 = sphi 0, %s47
      %s48 = sphi 0, %s45
      %s49 = sphi 0, %s48
      %s65 = sphi 0, %s49
      %s69 = sphi 0, %s69
      %s71 = sphi 0, %s69
      %s72 = sphi 0, %s71
      %s86 = sphi 0, %s72
    $region4: #{tpu_custom_call.1} parent=1 // loop_header_branch
      %12 = sbr.rel (%p10) target = $region8
    $region5: #{tpu_custom_call.1} parent=1 // loop_body
      %s14 = ssub.s32 %s9, 1
      %s15 = ssub.s32 %s9, 2
      %s16 = sadd.s32 %s9, 1
      %s17 = ssub.s32 %s9, %s16
      %p18 = scmp.eq.s32.totalorder %s17, 0
      %s20 = sadd.s32 %s19, 1
      %s21 = scalar_select %p18, %s19, %s20
      %p24 = pneg %p18
      %p25 = scmp.eq.s32.totalorder %s9, 2
      %p26 = por %p24, %p25
      %p27 = scmp.ne.s32.totalorder %s19, %s22
      %p28 = scmp.eq.s32.totalorder %s9, 0
      %p29 = por %p27, %p28
      %p30 = scmp.ne.s32.totalorder %s19, %s22
      %p31 = scmp.eq.s32.totalorder %s14, 2
      %p32 = por %p30, %p31
      %p33 = scmp.ne.s32.totalorder %s22, %s23
      %p34 = scmp.eq.s32.totalorder %s14, 0
      %p35 = por %p33, %p34
      %p36 = scmp.ne.s32.totalorder %s22, %s23
      %p37 = scmp.eq.s32.totalorder %s15, 2
      %p38 = por %p36, %p37
      %p40 = scmp.ne.s32.totalorder %s23, %s39
      %p41 = scmp.eq.s32.totalorder %s15, 0
      %p42 = por %p40, %p41
      %s43 = ssub.s32 %s9, %s16
      %p44 = scmp.eq.s32.totalorder %s43, 0
      %s46 = sadd.s32 %s45, 1
      %s47 = scalar_select %p44, %s45, %s46
      %p50 = pneg %p44
      %p51 = scmp.eq.s32.totalorder %s9, 2
      %p52 = por %p50, %p51
      %p53 = scmp.ne.s32.totalorder %s45, %s48
      %p54 = scmp.eq.s32.totalorder %s9, 0
      %p55 = por %p53, %p54
      %p56 = scmp.ne.s32.totalorder %s45, %s48
      %p57 = scmp.eq.s32.totalorder %s14, 2
      %p58 = por %p56, %p57
      %p59 = scmp.ne.s32.totalorder %s48, %s49
      %p60 = scmp.eq.s32.totalorder %s14, 0
      %p61 = por %p59, %p60
      %p62 = scmp.ne.s32.totalorder %s48, %s49
      %p63 = scmp.eq.s32.totalorder %s15, 2
      %p64 = por %p62, %p63
      %p66 = scmp.ne.s32.totalorder %s49, %s65
      %p67 = scmp.eq.s32.totalorder %s15, 0
      %p68 = por %p66, %p67
      %s70 = sadd.s32 %s69, 1
      %p73 = scmp.eq.s32.totalorder %s9, 2
      %p74 = scmp.ne.s32.totalorder %s69, %s71
      %p75 = scmp.eq.s32.totalorder %s9, 0
      %p76 = por %p74, %p75
      %p77 = scmp.ne.s32.totalorder %s69, %s71
      %p78 = scmp.eq.s32.totalorder %s14, 2
      %p79 = por %p77, %p78
      %p80 = scmp.ne.s32.totalorder %s71, %s72
      %p81 = scmp.eq.s32.totalorder %s14, 0
      %p82 = por %p80, %p81
      %p83 = scmp.ne.s32.totalorder %s71, %s72
      %p84 = scmp.eq.s32.totalorder %s15, 2
      %p85 = por %p83, %p84
      %p87 = scmp.ne.s32.totalorder %s72, %s86
      %p88 = scmp.eq.s32.totalorder %s15, 0
      %p89 = por %p87, %p88
      %p90 = scmp.le.s32.totalorder 1, %s9
      %p91 = scmp.lt.s32.totalorder %s9, 4
      %p92 = pnand %p90, %p91
      %p93 = pneg %p92
      // Predicated region
      $region9: #{tpu_custom_call.1} parent=5 // pred_check
        _
      $region10: #{tpu_custom_call.1} parent=5 // pred_check_branch
        %95 = sbr.rel (%p92) target = $region12
      $region11: #{tpu_custom_call.1} parent=5 // pred_region
        %s96 = ssub.s32 %s9, 1
      $region12: #{tpu_custom_call.1} parent=5 // pred_fallthru
        _
      %p97 = scmp.lt.s32.totalorder %s9, 3
      // Predicated region
      $region13: #{tpu_custom_call.1} parent=5 // pred_check
        %p98 = pneg %p97
      $region14: #{tpu_custom_call.1} parent=5 // pred_check_branch
        %100 = sbr.rel (%p98) target = $region16
      $region15: #{tpu_custom_call.1} parent=5 // pred_region
        // Predicated region
        $region17: #{tpu_custom_call.1} parent=15 // pred_check
          %p101 = pneg %p29
        $region18: #{tpu_custom_call.1} parent=15 // pred_check_branch
          %103 = sbr.rel (%p101) target = $region20
        $region19: #{tpu_custom_call.1} parent=15 // pred_region
          %p104 = scmp.lt.s32.totalorder %s9, 2
          %s105 = scalar_select %p104, %s9, 2
          %s106 = scalar_lea.vmem %s0, %s105
        $region20: #{tpu_custom_call.1} parent=15 // pred_fallthru
          _
        // Predicated region
        $region21: #{tpu_custom_call.1} parent=15 // pred_check
          %p107 = pneg %p55
        $region22: #{tpu_custom_call.1} parent=15 // pred_check_branch
          %109 = sbr.rel (%p107) target = $region24
        $region23: #{tpu_custom_call.1} parent=15 // pred_region
          %s110 = smul.u32 2, %s9
          %p111 = scmp.lt.s32.totalorder %s110, 5
          %s112 = scalar_select %p111, %s110, 5
          %s113 = smul.addr %s112, 4
          %s114 = scalar_lea.vmem %s1, %s113
          %s115 = smul.u32 2, %s9
        $region24: #{tpu_custom_call.1} parent=15 // pred_fallthru
          _
      $region16: #{tpu_custom_call.1} parent=5 // pred_fallthru
        _
      %p116 = scmp.le.s32.totalorder 1, %s9
      %p117 = scmp.lt.s32.totalorder %s9, 4
      %p118 = pnand %p116, %p117
      %p119 = pneg %p118
      // Predicated region
      $region25: #{tpu_custom_call.1} parent=5 // pred_check
        _
      $region26: #{tpu_custom_call.1} parent=5 // pred_check_branch
        %121 = sbr.rel (%p118) target = $region28
      $region27: #{tpu_custom_call.1} parent=5 // pred_region
        %s122 = ssub.s32 %s9, 1
        %p123 = scmp.lt.s32.totalorder %s14, 2
        %s124 = scalar_select %p123, %s14, 2
        %s125 = scalar_lea.vmem %s0, %s124
        %p126 = pneg %p35
        %p127 = pneg %p32
        %s128 = smul.u32 2, %s14
        %p129 = scmp.lt.s32.totalorder %s128, 5
        %s130 = scalar_select %p129, %s128, 5
        %s131 = smul.addr %s130, 4
        %s132 = scalar_lea.vmem %s1, %s131
        %p133 = pneg %p61
        %p134 = pneg %p58
        %p135 = pneg %p82
        %p136 = pneg %p79
        %p137 = scmp.lt.s32.totalorder %s14, 2
        %s138 = scalar_select %p137, %s14, 2
        %s139 = scalar_lea.vmem %s0, %s138
        %s140 = smul.u32 2, %s14
        %p141 = scmp.lt.s32.totalorder %s140, 5
        %s142 = scalar_select %p141, %s140, 5
        %s143 = smul.addr %s142, 4
        %s144 = scalar_lea.vmem %s1, %s143
        %s145 = smul.u32 2, %s14
        %p147 = scmp.eq.s32.totalorder %s14, 0
        // Predicated region
        $region29: #{tpu_custom_call.1} parent=27 // pred_check
          %p148 = pneg %p147
        $region30: #{tpu_custom_call.1} parent=27 // pred_check_branch
          %150 = sbr.rel (%p148) target = $region32
        $region31: #{tpu_custom_call.1} parent=27 // pred_region
          %vm151 = vcmask 261120
          %152 = vst.msk [vmem:[#allocation2] sm:$0xff] %vm151, 0.0
          %153 = vst.msk [vmem:[#allocation2 + $0x8] sm:$0xff] %vm151, 0.0
        $region32: #{tpu_custom_call.1} parent=27 // pred_fallthru
          _
        %v154 = vld [vmem:[%s139] sm:$0x1]
        %v155 = vlaneseq
        %v156 = vshrl.u32 %v155, 7
        %v157 = vadd.s32 %v156, 8
        %v158 = vlaneseq
        %v159 = vshrl.u32 %v158, 7
        %v160 = vsub.s32 0, %v159
        %v161 = vrot.slane %v154, %v160
        %vm162 = vcmp.eq.s32.totalorder %v156, %v161
        %vm163 = vcmp.eq.s32.totalorder %v157, %v161
        %v164 = vsel %vm162, 1, 0
        %v165 = vsel %vm163, 1, 0
        %v166 = vcvt.s32.f32 %v164
        %v167 = vcvt.s32.f32 %v165
        %v168 = vpack.c.bf16 %v167, %v166
        %v169 = vld [vmem:[#allocation2] sm:$0xff]
        %v170 = vld [vmem:[#allocation2 + $0x8] sm:$0xff]
        %v171 = vld [vmem:[%s144] sm:$0xf]
        %v172 = vld [vmem:[%s144 + $0x4] sm:$0xf]
        %v175 = vunpack.c.l.b16 %v171
        %v176 = vunpack.c.l.b16 %v172
        %v177 = vpack.c.b16 %v176, %v175
        %vm179 = vcmask 130048
        %v181 = vsel %vm179, %v168, 0
        %183 = vmatprep.subr.bf16.mxu0 0
        %184 = vmatpush1.bf16.msra.mxu0 0
        %185 = vmatprep.subr.bf16.mxu0 0
        %186 = vmatpush1.bf16.msra.mxu0 0
        %187 = vmatprep.subr.bf16.mxu0 0
        %188 = vmatpush1.bf16.msra.mxu0 0
        %189 = vmatprep.subr.bf16.mxu0 0
        %190 = vmatpush1.bf16.msra.mxu0 0
        %191 = vmatprep.subr.bf16.mxu0 0
        %192 = vmatpush1.bf16.msra.mxu0 0
        %193 = vmatprep.subr.bf16.mxu0 0
        %194 = vmatpush1.bf16.msra.mxu0 0
        %195 = vmatprep.subr.bf16.mxu0 0
        %196 = vmatpush1.bf16.msra.mxu0 0
        %197 = vmatprep.subr.bf16.mxu0 0
        %198 = vmatpush1.bf16.msra.mxu0 %v177
        %199 = vmatprep.subr.bf16.mxu0 0
        %200 = vmatpush2.bf16.msra.mxu0 0
        %201 = vmatprep.subr.bf16.mxu0 0
        %202 = vmatpush2.bf16.msra.mxu0 0
        %203 = vmatprep.subr.bf16.mxu0 0
        %204 = vmatpush2.bf16.msra.mxu0 0
        %205 = vmatprep.subr.bf16.mxu0 0
        %206 = vmatpush2.bf16.msra.mxu0 0
        %207 = vmatprep.subr.bf16.mxu0 0
        %208 = vmatpush2.bf16.msra.mxu0 0
        %209 = vmatprep.subr.bf16.mxu0 0
        %210 = vmatpush2.bf16.msra.mxu0 0
        %211 = vmatprep.subr.bf16.mxu0 0
        %212 = vmatpush2.bf16.msra.mxu0 0
        %213 = vmatprep.subr.bf16.mxu0 0
        %214 = vmatpush2.bf16.msra.mxu0 0
        %215 = vmatprep.mubr.bf16.mxu0 0
        %216 = vmatmul.mubr.bf16.gmra.mxu0 %v181
        %v217 = vpop.f32.mrf.mxu0
        %v218 = vadd.f32 0.0, %v217
        %v219 = vpop.f32.mrf.mxu0
        %v220 = vpop.f32.mrf.mxu0
        %v221 = vadd.f32 0.0, %v220
        %v222 = vpop.f32.mrf.mxu0
        %223 = vdwg.mxu0
        %v224 = vadd.f32 %v169, %v218
        %v225 = vadd.f32 %v170, %v221
        %vm226 = vcmask 261120
        %227 = vst.msk [vmem:[#allocation2] sm:$0xff] %vm226, %v224
        %228 = vst.msk [vmem:[#allocation2 + $0x8] sm:$0xff] %vm226, %v225
        // Predicated region
        $region33: #{tpu_custom_call.1} parent=27 // pred_check
          %p229 = pneg %p79
        $region34: #{tpu_custom_call.1} parent=27 // pred_check_branch
          %231 = sbr.rel (%p229) target = $region36
        $region35: #{tpu_custom_call.1} parent=27 // pred_region
          %s233 = ssub.s32 256, 256
          %234 = vsyncadd [#allocation3], %s233
          %s235 = sshll.u32 [#allocation2], 4
          %s236 = int_to_ptr.vmem [resolvable:$true] %s235
          %241 = dma.vmem_to_hbm [thread:$0]  %s236, 256, %s2, [#allocation3], 128, 128, 8
        $region36: #{tpu_custom_call.1} parent=27 // pred_fallthru
          _
        // Predicated region
        $region37: #{tpu_custom_call.1} parent=27 // pred_check
          %p242 = pneg %p79
        $region38: #{tpu_custom_call.1} parent=27 // pred_check_branch
          %244 = sbr.rel (%p242) target = $region40
        $region39: #{tpu_custom_call.1} parent=27 // pred_region
          %245 = dma.done [#allocation3], 256
        $region40: #{tpu_custom_call.1} parent=27 // pred_fallthru
          _
      $region28: #{tpu_custom_call.1} parent=5 // pred_fallthru
        _
      %p246 = scmp.le.s32.totalorder 2, %s9
      // Predicated region
      $region41: #{tpu_custom_call.1} parent=5 // pred_check
        %p247 = pneg %p246
      $region42: #{tpu_custom_call.1} parent=5 // pred_check_branch
        %249 = sbr.rel (%p247) target = $region44
      $region43: #{tpu_custom_call.1} parent=5 // pred_region
        %s250 = ssub.s32 %s9, 2
      $region44: #{tpu_custom_call.1} parent=5 // pred_fallthru
        _
    $region6: #{tpu_custom_call.1} parent=1 // loop_footer
      %s13 = sadd.s32 1, %s9
    $region7: #{tpu_custom_call.1} parent=1 // loop_footer_branch
      %8 = sbr.rel target = $region3
    $region8: #{tpu_custom_call.1} parent=1 // loop_exit
      _
    %251 = vsyncpa [#allocation3], 1
    %s252 = scalar_lea.sflag [#allocation3], 1
    %253 = vsyncpa %s252, 1

</llo_original>
